<compile_context>
chip_gen: v6e
topology: v6e:2x2x1
jax: 0.10.0
libtpu: 0.0.40
codegen_flags: <defaults>
</compile_context>

<pallas_src>
import jax
import jax.numpy as jnp
from jax.experimental import pallas as pl
from jax.experimental.pallas import tpu as pltpu

_SUBLANE = 8       # sublane granularity for the batch tile
_TM_MAX = 4096     # max batch-tile rows (multiple of 8); ~MB-scale VMEM on all gens


def _round_up(x, m):
    return ((x + m - 1) // m) * m


def _choose_tm(batch, tm_max=_TM_MAX):
    """Batch-tile rows: as large as possible, but >=2 grid blocks for v7x megacore."""
    if batch <= _SUBLANE:
        return batch                       # full-array block (legal even if < 8 rows)
    b8 = _round_up(batch, _SUBLANE)
    if b8 <= tm_max:
        # Whole batch would fit one tile -> split in two so both v7x TCs get work.
        return _round_up(pl.cdiv(b8, 2), _SUBLANE)
    return tm_max


# ---------------------------------------------------------------------------
# Pallas kernels
# ---------------------------------------------------------------------------
def _mean_kernel(x_ref, w_ref, b_ref, mean_ref):
    # bf16 x/W on the MXU, f32 accumulation, f32 bias add on the VPU.
    acc = jnp.dot(x_ref[...], w_ref[...], preferred_element_type=jnp.float32)
    mean_ref[...] = (acc + b_ref[...]).astype(mean_ref.dtype)


def _mean_logprob_kernel(x_ref, w_ref, b_ref, act_ref, nhiv_ref, const_ref,
                         mean_ref, logp_ref):
    acc = jnp.dot(x_ref[...], w_ref[...], preferred_element_type=jnp.float32)
    mean = acc + b_ref[...]
    mean_ref[...] = mean.astype(mean_ref.dtype)
    diff = act_ref[...] - mean
    # log N(a; mean, std) summed over the action dim:
    #   sum(-(a-mean)^2 / (2 var)) - sum(logstd) - O/2*log(2*pi)
    logp = jnp.sum(diff * diff * nhiv_ref[...], axis=-1, keepdims=True) + const_ref[...]
    logp_ref[...] = logp.astype(logp_ref.dtype)


# ---------------------------------------------------------------------------
# Parameter preparation (do once, outside the per-step forward path).
# ---------------------------------------------------------------------------
def prepare_params(weight, bias, logstd_bias, *, compute_dtype=jnp.bfloat16):
    """weight: (O, I) torch-Linear layout; bias: (O,); logstd_bias: (O, 1)."""
    num_outputs, _ = weight.shape
    w_t = jnp.asarray(weight, jnp.float32).T.astype(compute_dtype)           # (I, O)
    bias_row = jnp.asarray(bias, jnp.float32).reshape(1, num_outputs)        # (1, O)
    logstd_row = jnp.asarray(logstd_bias, jnp.float32).reshape(1, num_outputs)
    std_row = jnp.exp(logstd_row)                                            # (1, O)
    return {"w_t": w_t, "bias_row": bias_row,
            "logstd_row": logstd_row, "std_row": std_row}


# ---------------------------------------------------------------------------
# Forward pass: mean + (lazy-broadcast) std.
# ---------------------------------------------------------------------------
def diag_gaussian_forward(x, params, *, tm_max=_TM_MAX):
    B, num_inputs = x.shape
    w_t = params["w_t"]
    num_outputs = w_t.shape[1]
    if B == 0:
        z = jnp.zeros((0, num_outputs), jnp.float32)
        return z, z

    tm = _choose_tm(B, tm_max)
    grid = (pl.cdiv(B, tm),)
    x_c = x.astype(w_t.dtype)

    cost = pl.CostEstimate(
        flops=2 * B * num_inputs * num_outputs,
        transcendentals=0,
        bytes_accessed=(jnp.dtype(w_t.dtype).itemsize * (B * num_inputs
                                                         + num_inputs * num_outputs)
                        + 4 * num_outputs + 4 * B * num_outputs),
    )

    mean = pl.pallas_call(
        _mean_kernel,
        out_shape=jax.ShapeDtypeStruct((B, num_outputs), jnp.float32),
        grid=grid,
        in_specs=[
            pl.BlockSpec((tm, num_inputs), lambda i: (i, 0)),        # x tile (streams)
            pl.BlockSpec((num_inputs, num_outputs), lambda i: (0, 0)),  # W.T (resident)
            pl.BlockSpec((1, num_outputs), lambda i: (0, 0)),           # bias row
        ],
        out_specs=pl.BlockSpec((tm, num_outputs), lambda i: (i, 0)),
        compiler_params=pltpu.CompilerParams(dimension_semantics=("parallel",)),
        cost_estimate=cost,
    )(x_c, w_t, params["bias_row"])

    # std depends only on the (O,) parameter: lazy broadcast, no per-batch exp.
    std = jnp.broadcast_to(params["std_row"], (B, num_outputs))
    return mean, std


# ---------------------------------------------------------------------------
# Fused forward + log_probs (evaluate-actions path): writeback is mean + (B,1).
# ---------------------------------------------------------------------------
def diag_gaussian_forward_and_log_probs(x, params, actions, *, tm_max=_TM_MAX):
    B, num_inputs = x.shape
    w_t = params["w_t"]
    num_outputs = w_t.shape[1]
    if B == 0:
        z = jnp.zeros((0, num_outputs), jnp.float32)
        return z, z, jnp.zeros((0, 1), jnp.float32)

    tm = _choose_tm(B, tm_max)
    grid = (pl.cdiv(B, tm),)
    x_c = x.astype(w_t.dtype)

    logstd_row = params["logstd_row"]
    neg_half_inv_var = (-0.5 * jnp.exp(-2.0 * logstd_row)).astype(jnp.float32)  # (1, O)
    const = (-jnp.sum(logstd_row)
             - 0.5 * num_outputs * jnp.log(2.0 * jnp.pi)).reshape(1, 1).astype(jnp.float32)

    mean, logp = pl.pallas_call(
        _mean_logprob_kernel,
        out_shape=(jax.ShapeDtypeStruct((B, num_outputs), jnp.float32),
                   jax.ShapeDtypeStruct((B, 1), jnp.float32)),
        grid=grid,
        in_specs=[
            pl.BlockSpec((tm, num_inputs), lambda i: (i, 0)),           # x tile
            pl.BlockSpec((num_inputs, num_outputs), lambda i: (0, 0)),  # W.T
            pl.BlockSpec((1, num_outputs), lambda i: (0, 0)),           # bias row
            pl.BlockSpec((tm, num_outputs), lambda i: (i, 0)),          # actions tile
            pl.BlockSpec((1, num_outputs), lambda i: (0, 0)),           # -0.5/var row
            pl.BlockSpec((1, 1), lambda i: (0, 0)),                     # logp constant
        ],
        out_specs=[pl.BlockSpec((tm, num_outputs), lambda i: (i, 0)),
                   pl.BlockSpec((tm, 1), lambda i: (i, 0))],
        compiler_params=pltpu.CompilerParams(dimension_semantics=("parallel",)),
    )(x_c, w_t, params["bias_row"], actions.astype(jnp.float32),
      neg_half_inv_var, const)

    std = jnp.broadcast_to(params["std_row"], (B, num_outputs))
    return mean, std, logp


# ---------------------------------------------------------------------------
# FixedNormal helpers (plain JAX glue over the distribution parameters).
# ---------------------------------------------------------------------------
def fixed_normal_log_probs(mean, std, actions):
    var = std * std
    log_prob = (-((actions - mean) ** 2) / (2.0 * var)
                - jnp.log(std) - 0.5 * jnp.log(2.0 * jnp.pi))
    return jnp.sum(log_prob, axis=-1, keepdims=True)


def fixed_normal_entropy(mean, std):
    # std may be the (1, O) row or a full (B, O) array; sum over O once and
    # broadcast to the batch (no (B, O) materialization for the row case).
    ent = 0.5 + 0.5 * jnp.log(2.0 * jnp.pi) + jnp.log(std)
    ent = jnp.sum(ent, axis=-1)
    return jnp.broadcast_to(ent, mean.shape[:-1])


def fixed_normal_mode(mean, std):
    return mean


# ---------------------------------------------------------------------------
# Deterministic parameter init (mirrors the PyTorch __init__):
#   fc_mean.weight -> orthogonal init, fc_mean.bias -> 0, _bias -> zeros(O, 1)
# ---------------------------------------------------------------------------
def init_params(key, num_inputs, num_outputs):
    a = jax.random.normal(
        key, (max(num_outputs, num_inputs), min(num_outputs, num_inputs)),
        dtype=jnp.float32)
    q, r = jnp.linalg.qr(a)
    q = q * jnp.sign(jnp.diag(r))[None, :]
    if num_outputs < num_inputs:
        weight = q.T[:num_outputs, :num_inputs]
    else:
        weight = q[:num_outputs, :num_inputs]
    bias = jnp.zeros((num_outputs,), dtype=jnp.float32)
    logstd_bias = jnp.zeros((num_outputs, 1), dtype=jnp.float32)
    return weight, bias, logstd_bias


def _reference(x, weight, bias, logstd_bias, compute_dtype=jnp.bfloat16):
    # Reference with the same bf16 input rounding and f32 accumulation as the kernel.
    x_c = x.astype(compute_dtype).astype(jnp.float32)
    w_c = weight.astype(compute_dtype).astype(jnp.float32)
    ref_mean = x_c @ w_c.T + bias[None, :]
    ref_std = jnp.exp(jnp.zeros_like(ref_mean) + logstd_bias.T.reshape(1, -1))
    return ref_mean, ref_std


if __name__ == "__main__":
    num_inputs = 32
    num_outputs = 8

    key = jax.random.PRNGKey(0)
    k_param, k_x1, k_x2, k_a = jax.random.split(key, 4)
    weight, bias, logstd_bias = init_params(k_param, num_inputs, num_outputs)
    params = prepare_params(weight, bias, logstd_bias)   # hoisted out of per-call path

    # --- small batch (single grid block, full-array row block) --------------
    x_small = jax.random.normal(k_x1, (4, num_inputs), dtype=jnp.float32)
    mean, std = diag_gaussian_forward(x_small, params)
    mean = jax.block_until_ready(mean)
    std = jax.block_until_ready(std)
    ref_mean, ref_std = _reference(x_small, weight, bias, logstd_bias)
    assert jnp.allclose(mean, ref_mean, atol=1e-3, rtol=1e-3)
    assert jnp.allclose(std, ref_std, atol=1e-5, rtol=1e-5)

    # --- larger batch: split into 2 blocks (v7x megacore path) --------------
    x_big = jax.random.normal(k_x2, (640, num_inputs), dtype=jnp.float32)
    mean_b, std_b = diag_gaussian_forward(x_big, params)
    mean_b = jax.block_until_ready(mean_b)
    std_b = jax.block_until_ready(std_b)
    ref_mean_b, ref_std_b = _reference(x_big, weight, bias, logstd_bias)
    assert jnp.allclose(mean_b, ref_mean_b, atol=1e-3, rtol=1e-3)
    assert jnp.allclose(std_b, ref_std_b, atol=1e-5, rtol=1e-5)

    # --- fused mean + log_probs path -----------------------------------------
    actions = ref_mean_b + 0.5 * jax.random.normal(
        k_a, (640, num_outputs), dtype=jnp.float32)
    mean_f, std_f, logp_f = diag_gaussian_forward_and_log_probs(x_big, params, actions)
    mean_f = jax.block_until_ready(mean_f)
    logp_f = jax.block_until_ready(logp_f)
    ref_logp = fixed_normal_log_probs(ref_mean_b, ref_std_b, actions)
    assert jnp.allclose(mean_f, ref_mean_b, atol=1e-3, rtol=1e-3)
    assert jnp.allclose(logp_f, ref_logp, atol=1e-3, rtol=1e-3)

    # --- distribution glue helpers -------------------------------------------
    ent = jax.block_until_ready(fixed_normal_entropy(mean_b, params["std_row"]))
    ref_ent = jnp.sum(0.5 + 0.5 * jnp.log(2.0 * jnp.pi) + jnp.log(ref_std_b), axis=-1)
    assert jnp.allclose(ent, ref_ent, atol=1e-5, rtol=1e-5)
    _ = jax.block_until_ready(fixed_normal_log_probs(mean_b, std_b, actions))
    _ = jax.block_until_ready(fixed_normal_mode(mean_b, std_b))

    print("KERNEL_OK")
</pallas_src>

<mosaic_0001>
module attributes {stable_mosaic.version = 11 : i64} {
  func.func @_mean_kernel(%arg0: i32, %arg1: memref<4x32xbf16, #tpu.memory_space<vmem>>, %arg2: memref<32x8xbf16, #tpu.memory_space<vmem>>, %arg3: memref<1x8xf32, #tpu.memory_space<vmem>>, %arg4: memref<4x8xf32, #tpu.memory_space<vmem>>) attributes {dimension_semantics = [#tpu.dimension_semantics<parallel>], iteration_bounds = array<i64: 1>, scalar_prefetch = 0 : i64, scratch_operands = 0 : i64, tpu.core_type = #tpu.core_type<tc>, window_params = [{transform_indices = @transform_0, window_bounds = array<i64: 4, 32>}, {pipeline_mode = #tpu.pipeline_mode<synchronous>, transform_indices = @transform_1, window_bounds = array<i64: 32, 8>}, {pipeline_mode = #tpu.pipeline_mode<synchronous>, transform_indices = @transform_2, window_bounds = array<i64: 1, 8>}, {transform_indices = @transform_3, window_bounds = array<i64: 4, 8>}]} {
    %c0 = arith.constant 0 : index
    %c0_0 = arith.constant 0 : index
    %0 = vector.load %arg1[%c0, %c0_0] : memref<4x32xbf16, #tpu.memory_space<vmem>>, vector<4x32xbf16>
    %c0_1 = arith.constant 0 : index
    %c0_2 = arith.constant 0 : index
    %1 = vector.load %arg2[%c0_1, %c0_2] : memref<32x8xbf16, #tpu.memory_space<vmem>>, vector<32x8xbf16>
    %cst = arith.constant dense<0.000000e+00> : vector<4x8xf32>
    %2 = tpu.matmul %0, %1, %cst {dimension_numbers = #tpu.dot_dimension_numbers<[1], [0], [0], [1], [0, 0, 1, 1], [], []>} : vector<4x32xbf16>, vector<32x8xbf16>, vector<4x8xf32> -> vector<4x8xf32>
    %c0_3 = arith.constant 0 : index
    %c0_4 = arith.constant 0 : index
    %3 = vector.load %arg3[%c0_3, %c0_4] : memref<1x8xf32, #tpu.memory_space<vmem>>, vector<1x8xf32>
    %4 = vector.broadcast %3 : vector<1x8xf32> to vector<4x8xf32>
    %5 = arith.addf %2, %4 : vector<4x8xf32>
    %c0_5 = arith.constant 0 : index
    %c0_6 = arith.constant 0 : index
    %6 = vector.load %arg4[%c0_5, %c0_6] : memref<4x8xf32, #tpu.memory_space<vmem>>, vector<4x8xf32>
    tpu.vector_store %arg4[%c0_5, %c0_6], %5 {strides = array<i32>} : memref<4x8xf32, #tpu.memory_space<vmem>>, vector<4x8xf32>,
    return
  }
  func.func @transform_0(%arg0: i32) -> (i32, i32) {
    %c0_i32 = arith.constant 0 : i32
    %c0_i32_0 = arith.constant 0 : i32
    return %arg0, %c0_i32 : i32, i32
  }
  func.func @transform_1(%arg0: i32) -> (i32, i32) {
    %c0_i32 = arith.constant 0 : i32
    %c0_i32_0 = arith.constant 0 : i32
    %c0_i32_1 = arith.constant 0 : i32
    return %c0_i32, %c0_i32_0 : i32, i32
  }
  func.func @transform_2(%arg0: i32) -> (i32, i32) {
    %c0_i32 = arith.constant 0 : i32
    %c0_i32_0 = arith.constant 0 : i32
    %c0_i32_1 = arith.constant 0 : i32
    return %c0_i32, %c0_i32_0 : i32, i32
  }
  func.func @transform_3(%arg0: i32) -> (i32, i32) {
    %c0_i32 = arith.constant 0 : i32
    %c0_i32_0 = arith.constant 0 : i32
    return %arg0, %c0_i32 : i32, i32
  }
}

</mosaic_0001>

<llo_original>
// kernel: tpu_custom_call.1
$region0: #{tpu_custom_call.1}
  #allocation0 [shape = 'u32[]', space=smem, size = 0x4, offset = 0x4, fixed_abs, tag = 'smem constant byte address 0x4 - core index']
  #allocation1 [shape = 'u32[144,128]{1,0:T(1,128)}', space=vmem, size = 0x12000, scoped, tag = 'internal scratch']
  %s0 = inlined_call_operand.vmem [shape: bf16[4,32], index: 0, kind: input, shape index: {}]
  %s1 = inlined_call_operand.vmem [shape: bf16[32,8], index: 1, kind: input, shape index: {}]
  %s2 = inlined_call_operand.vmem [shape: f32[1,8], index: 2, kind: input, shape index: {}]
  %s3 = inlined_call_operand.hbm [shape: f32[4,8], index: 3, kind: output, shape index: {}]
  %s4 = sld [smem:[#allocation0]]
  $region22: #{tpu_custom_call.1} parent=0
    _
  %s6 = ssub.s32 1, %s4
  %s7 = scalar_select 0, %s6, %s4
  $region1: #{tpu_custom_call.1} parent=0
    #allocation2 [shape = 'u8[2048]{0}', space=vmem, size = 0x800, scoped, tag = 'output window, operand 0, single buffered']
    #allocation3 [shape = 's32[1]{0}', space=sflag, size = 0x4, scoped, tag = 'scoped memory for tpu_custom_call.1']
    %8 = vsyncpa [#allocation3], 0
    // Predicated region
    $region2: #{tpu_custom_call.1} parent=1 // pred_check
      _
    $region3: #{tpu_custom_call.1} parent=1 // pred_check_branch
      %10 = sbr.rel (0) target = $region5
    $region4: #{tpu_custom_call.1} parent=1 // pred_region
      _
    $region5: #{tpu_custom_call.1} parent=1 // pred_fallthru
      _
    // Predicated region
    $region6: #{tpu_custom_call.1} parent=1 // pred_check
      _
    $region7: #{tpu_custom_call.1} parent=1 // pred_check_branch
      %12 = sbr.rel (0) target = $region9
    $region8: #{tpu_custom_call.1} parent=1 // pred_region
      _
    $region9: #{tpu_custom_call.1} parent=1 // pred_fallthru
      _
    // Predicated region
    $region10: #{tpu_custom_call.1} parent=1 // pred_check
      _
    $region11: #{tpu_custom_call.1} parent=1 // pred_check_branch
      %14 = sbr.rel (0) target = $region13
    $region12: #{tpu_custom_call.1} parent=1 // pred_region
      _
    $region13: #{tpu_custom_call.1} parent=1 // pred_fallthru
      _
    %v16 = vld [vmem:[%s0] sm:$0x3]
    %v17 = vld [vmem:[%s1] sm:$0xf]
    %v18 = vld [vmem:[%s1 + $0x4] sm:$0xf]
    %v19 = vld [vmem:[%s1 + $0x8] sm:$0xf]
    %v20 = vld [vmem:[%s1 + $0xc] sm:$0xf]
    %v21 = vld [vmem:[%s2] sm:$0x1]
    %v23 = vlaneseq
    %v24 = vshrl.u32 %v23, 7
    %v25 = vsub.s32 0, %v24
    %v26 = vrot.slane %v21, %v25
    %v32 = vunpack.c.l.b16 %v17
    %v33 = vunpack.c.l.b16 %v18
    %v34 = vunpack.c.l.b16 %v19
    %v35 = vunpack.c.l.b16 %v20
    %v36 = vpack.c.b16 %v33, %v32
    %v37 = vpack.c.b16 %v35, %v34
    %vm40 = vcmask 261120
    %v42 = vsel %vm40, %v16, 0
    %44 = vmatprep.subr.bf16.mxu0 0
    %45 = vmatpush1.bf16.msra.mxu0 0
    %46 = vmatprep.subr.bf16.mxu0 0
    %47 = vmatpush1.bf16.msra.mxu0 0
    %48 = vmatprep.subr.bf16.mxu0 0
    %49 = vmatpush1.bf16.msra.mxu0 0
    %50 = vmatprep.subr.bf16.mxu0 0
    %51 = vmatpush1.bf16.msra.mxu0 0
    %52 = vmatprep.subr.bf16.mxu0 0
    %53 = vmatpush1.bf16.msra.mxu0 0
    %54 = vmatprep.subr.bf16.mxu0 0
    %55 = vmatpush1.bf16.msra.mxu0 0
    %56 = vmatprep.subr.bf16.mxu0 0
    %57 = vmatpush1.bf16.msra.mxu0 %v37
    %58 = vmatprep.subr.bf16.mxu0 0
    %59 = vmatpush1.bf16.msra.mxu0 %v36
    %60 = vmatprep.subr.bf16.mxu0 0
    %61 = vmatpush2.bf16.msra.mxu0 0
    %62 = vmatprep.subr.bf16.mxu0 0
    %63 = vmatpush2.bf16.msra.mxu0 0
    %64 = vmatprep.subr.bf16.mxu0 0
    %65 = vmatpush2.bf16.msra.mxu0 0
    %66 = vmatprep.subr.bf16.mxu0 0
    %67 = vmatpush2.bf16.msra.mxu0 0
    %68 = vmatprep.subr.bf16.mxu0 0
    %69 = vmatpush2.bf16.msra.mxu0 0
    %70 = vmatprep.subr.bf16.mxu0 0
    %71 = vmatpush2.bf16.msra.mxu0 0
    %72 = vmatprep.subr.bf16.mxu0 0
    %73 = vmatpush2.bf16.msra.mxu0 0
    %74 = vmatprep.subr.bf16.mxu0 0
    %75 = vmatpush2.bf16.msra.mxu0 0
    %76 = vmatprep.mubr.bf16.mxu0 0
    %77 = vmatmul.mubr.bf16.gmra.mxu0 %v42
    %v78 = vpop.f32.mrf.mxu0
    %v79 = vadd.f32 %v26, %v78
    %v80 = vpop.f32.mrf.mxu0
    %v81 = vpop.f32.mrf.mxu0
    %v82 = vpop.f32.mrf.mxu0
    %83 = vdwg.mxu0
    %vm84 = vcmask 60416
    %85 = vst.msk [vmem:[#allocation2] sm:$0xf] %vm84, %v79
    // Predicated region
    $region14: #{tpu_custom_call.1} parent=1 // pred_check
      _
    $region15: #{tpu_custom_call.1} parent=1 // pred_check_branch
      %87 = sbr.rel (0) target = $region17
    $region16: #{tpu_custom_call.1} parent=1 // pred_region
      %s89 = ssub.s32 64, 64
      %90 = vsyncadd [#allocation3], %s89
      %s92 = sshll.u32 [#allocation2], 4
      %s93 = int_to_ptr.vmem [resolvable:$true] %s92
      %95 = dma.vmem_to_hbm [thread:$0]  %s93, 64, %s3, [#allocation3]
    $region17: #{tpu_custom_call.1} parent=1 // pred_fallthru
      _
    // Predicated region
    $region18: #{tpu_custom_call.1} parent=1 // pred_check
      _
    $region19: #{tpu_custom_call.1} parent=1 // pred_check_branch
      %97 = sbr.rel (0) target = $region21
    $region20: #{tpu_custom_call.1} parent=1 // pred_region
      %98 = dma.done [#allocation3], 64
    $region21: #{tpu_custom_call.1} parent=1 // pred_fallthru
      _
    %99 = vsyncpa [#allocation3], 1

</llo_original>
